<compile_context>
chip_gen: v5e
topology: v5e:2x2
jax: 0.10.0
libtpu: 0.0.40
codegen_flags: <defaults>
</compile_context>

<pallas_src>
import functools

import jax
import jax.numpy as jnp
from jax import lax
from jax.experimental import pallas as pl
from jax.experimental.pallas import tpu as pltpu


def _round_up(v, m):
    return (v + m - 1) // m * m


def _softplus(x):
    # numerically stable softplus: max(x, 0) + log1p(exp(-|x|))
    return jnp.maximum(x, 0.0) + jnp.log1p(jnp.exp(-jnp.abs(x)))


def _leaky_relu(x, slope=0.01):
    # max(x, slope*x): 2 VALU ops instead of cmp + select + mul.
    return jnp.maximum(x, slope * x)


def _default_num_partials():
    """2 partials (one per TensorCore) on dual-TC chips, else 1."""
    try:
        info = pltpu.get_tpu_info()
        for attr in ("num_tensorcores", "tensorcores_per_chip", "num_cores",
                     "core_count"):
            n = getattr(info, attr, None)
            if n:
                return 2 if int(n) >= 2 else 1
    except Exception:
        pass
    return 1


def mi_kernel(x_ref, y_ref, ynext_ref, w1x_ref, w1y_ref, b1_ref, w2_ref, b2_ref,
              out_ref, acc_ref, *, n_tiles, tb, batch, inv_b, ragged):
    c = pl.program_id(0)   # partial index ("parallel" axis -> one per TensorCore)
    i = pl.program_id(1)   # batch-tile index ("arbitrary" reduction axis)

    @pl.when(i == 0)
    def _():
        acc_ref[...] = jnp.zeros_like(acc_ref)

    start = (c * n_tiles + i) * tb          # first logical batch row of this tile

    # ---- marginal partner rows: shuffle(y)[r] = y[(r+1) % batch] -------------
    # Within the tile this is a roll by -1 along rows; the single row whose
    # partner lives outside the tile (the tile's last *real* row) is patched
    # with the pre-gathered boundary row  y_next = y[min(start+tb, batch) % batch].
    y = y_ref[...]                                               # (tb, y_dim)
    y_shift = jnp.concatenate([y[1:, :], y[:1, :]], axis=0)      # in-tile roll(-1)
    local = lax.broadcasted_iota(jnp.int32, (tb, 1), 0)
    fix_row = jnp.minimum(tb - 1, (batch - 1) - start)           # last real row
    sy = jnp.where(local == fix_row, ynext_ref[0], y_shift)      # (tb, y_dim)

    # ---- first layer: h = leaky_relu(x @ W1x + y @ W1y + b1) -----------------
    # Streamed operands are cast to bf16 in-register (single-pass MXU); all
    # accumulation stays f32.  hx is shared by the joint and marginal branches.
    hx = jnp.dot(x_ref[...].astype(jnp.bfloat16), w1x_ref[...],
                 preferred_element_type=jnp.float32)
    hy_j = jnp.dot(y.astype(jnp.bfloat16), w1y_ref[...],
                   preferred_element_type=jnp.float32)
    hy_m = jnp.dot(sy.astype(jnp.bfloat16), w1y_ref[...],
                   preferred_element_type=jnp.float32)

    b1 = b1_ref[...]                         # (1, Hp) f32, broadcast over rows
    h_j = _leaky_relu(hx + hy_j + b1)        # (tb, Hp) f32
    h_m = _leaky_relu(hx + hy_m + b1)

    # ---- second layer, lane-dense: s^T = w2 @ h^T  ->  (1, tb) ---------------
    # Contracting the hidden (lane) dim of both operands keeps the logits
    # lane-dense, so the softplus / mask / reduction epilogue runs on ~tb/128
    # vregs, and the multiply+reduce runs on the MXU instead of VPU/XLU.
    w2 = w2_ref[...]                         # (1, Hp) f32
    b2 = b2_ref[0, 0]                        # scalar bias (SMEM)
    dn = (((1,), (1,)), ((), ()))            # contract minor dims (w2 @ h^T)
    s_j = lax.dot_general(w2, h_j, dn, preferred_element_type=jnp.float32) + b2
    s_m = lax.dot_general(w2, h_m, dn, preferred_element_type=jnp.float32) + b2

    # per-sample JS-MI terms, still (1, tb) lane-dense
    t = _softplus(-s_j) + _softplus(s_m)

    if ragged:   # compile-time flag: only emitted when padding rows exist at all
        col = lax.broadcasted_iota(jnp.int32, (1, tb), 1)
        t = jnp.where(start + col < batch, t, 0.0)

    acc_ref[...] += jnp.sum(t, keepdims=True)

    # Finalize (scale by -1/B) and write the output block only once per partial.
    @pl.when(i == n_tiles - 1)
    def _():
        out_ref[...] = jnp.broadcast_to(
            (acc_ref[...] * (-inv_b)).reshape(1, 1, 1), out_ref.shape)


def mi_forward(x, y, w1, b1, w2, b2, *, tb=4096, num_partials=None):
    """MI(x, y).

    Weights are stored transposed vs. PyTorch nn.Linear:
      w1: (x_dim + y_dim, hidden),  b1: (1, hidden)
      w2: (hidden, 1),              b2: (1, 1)

    First-layer operands are used in bfloat16 on the MXU (all accumulation in
    float32), so expect ~1e-2 relative error vs. a pure-f32 reference.
    """
    B, x_dim = x.shape
    y_dim = y.shape[1]
    H = w1.shape[1]
    assert w1.shape[0] == x_dim + y_dim
    assert B > 1, "shuffle() needs batch_size > 1"

    Hp = _round_up(H, 128)

    if num_partials is None:
        num_partials = _default_num_partials()
    if B < 2 * 128:                     # don't split tiny batches across cores
        num_partials = 1

    rows_per_partial = -(-B // num_partials)
    tb_eff = max(8, min(_round_up(tb, 8), _round_up(rows_per_partial, 8)))
    n_tiles = -(-rows_per_partial // tb_eff)
    total_tiles = num_partials * n_tiles
    total_rows = total_tiles * tb_eff
    ragged = total_rows != B

    # ---- tiny resident parameters (VMEM-resident, no per-sample HBM cost) ----
    # Padded hidden columns contribute exactly 0: leaky_relu(0 + 0 + 0) * 0 = 0.
    w1f = w1.astype(jnp.float32)
    w1x = jnp.pad(w1f[:x_dim], ((0, 0), (0, Hp - H))).astype(jnp.bfloat16)
    w1y = jnp.pad(w1f[x_dim:], ((0, 0), (0, Hp - H))).astype(jnp.bfloat16)
    b1p = jnp.pad(b1.astype(jnp.float32).reshape(1, H), ((0, 0), (0, Hp - H)))
    w2r = jnp.pad(w2.astype(jnp.float32).reshape(1, H), ((0, 0), (0, Hp - H)))
    b2p = b2.astype(jnp.float32).reshape(1, 1)

    # Per-tile boundary row for the in-kernel roll of y.  For a tile that ends
    # inside the batch this is the first y row of the next tile; for the tile
    # that contains row B-1 it is y[0] (the batch-wrap partner).  Only
    # total_tiles rows are gathered -- the shuffled copy of y never hits HBM.
    t_idx = jnp.arange(total_tiles, dtype=jnp.int32)
    nxt = jnp.minimum((t_idx + 1) * tb_eff, B) % B
    y_next = jnp.take(y, nxt, axis=0)[:, None, :]        # (total_tiles, 1, y_dim)

    kernel = functools.partial(mi_kernel, n_tiles=n_tiles, tb=tb_eff,
                               batch=B, inv_b=1.0 / B, ragged=ragged)

    def stream_spec(d):      # batch-tiled streaming input (raw dtype, no copies)
        return pl.BlockSpec((tb_eff, d), lambda c, i: (c * n_tiles + i, 0))

    def resident_spec(s):    # weight block, resident across the whole grid
        return pl.BlockSpec(s, lambda c, i: (0,) * len(s))

    cost = pl.CostEstimate(
        flops=2 * total_rows * Hp * (x_dim + 2 * y_dim + 2) + 8 * total_rows * Hp,
        transcendentals=4 * total_rows,
        bytes_accessed=x.dtype.itemsize * x.size + y.dtype.itemsize * y.size
        + 2 * (w1x.size + w1y.size)
        + 4 * (b1p.size + w2r.size + b2p.size + y_next.size
               + num_partials * 8 * 128),
    )

    out = pl.pallas_call(
        kernel,
        out_shape=jax.ShapeDtypeStruct((num_partials, 8, 128), jnp.float32),
        grid_spec=pltpu.PrefetchScalarGridSpec(
            num_scalar_prefetch=0,
            grid=(num_partials, n_tiles),
            in_specs=[
                stream_spec(x_dim),                              # x  (streamed)
                stream_spec(y_dim),                              # y  (streamed)
                pl.BlockSpec((1, 1, y_dim),
                             lambda c, i: (c * n_tiles + i, 0, 0)),  # boundary row
                resident_spec((x_dim, Hp)),                      # W1x (bf16)
                resident_spec((y_dim, Hp)),                      # W1y (bf16)
                resident_spec((1, Hp)),                          # b1  (f32)
                resident_spec((1, Hp)),                          # w2 row (f32)
                pl.BlockSpec(memory_space=pltpu.SMEM),           # b2 scalar
            ],
            out_specs=pl.BlockSpec((1, 8, 128), lambda c, i: (c, 0, 0)),
            scratch_shapes=[pltpu.VMEM((1, 1), jnp.float32)],
        ),
        compiler_params=pltpu.CompilerParams(
            dimension_semantics=("parallel", "arbitrary"),
            vmem_limit_bytes=40 * 1024 * 1024),
        cost_estimate=cost,
    )(x, y, y_next, w1x, w1y, b1p, w2r, b2p)

    # Sum the per-TensorCore partials (already scaled by -1/B in-kernel).
    return jnp.sum(out[:, 0, 0])


def reference_mi(x, y, w1, b1, w2, b2):
    """Pure-JAX f32 reference for sanity checking."""
    sy = jnp.roll(y, -1, axis=0)      # == shuffle(): index (arange(B)+1) % B

    def disc(a, b):
        inp = jnp.concatenate([a, b], axis=-1)
        h = jax.nn.leaky_relu(inp @ w1 + b1[0], negative_slope=0.01)
        return (h @ w2 + b2[0])[:, 0]

    s_j = disc(x, y)
    s_m = disc(x, sy)
    return -jnp.mean(jax.nn.softplus(-s_j)) - jnp.mean(jax.nn.softplus(s_m))


if __name__ == "__main__":
    # Small shapes consistent with MI(x_dim, y_dim, dropout); Disc uses
    # hidden_dim = y_dim.
    B, X_DIM, Y_DIM = 8, 32, 32
    HIDDEN = Y_DIM
    IN_DIM = X_DIM + Y_DIM

    key = jax.random.PRNGKey(0)
    kx, ky, kw1, kb1, kw2, kb2, kx2, ky2 = jax.random.split(key, 8)

    x = jax.random.normal(kx, (B, X_DIM), dtype=jnp.float32)
    y = jax.random.normal(ky, (B, Y_DIM), dtype=jnp.float32)

    # Deterministic parameter init (PyTorch Linear shapes, stored transposed):
    w1 = jax.random.normal(kw1, (IN_DIM, HIDDEN), dtype=jnp.float32) * 0.1
    b1 = jax.random.normal(kb1, (1, HIDDEN), dtype=jnp.float32) * 0.1
    w2 = jax.random.normal(kw2, (HIDDEN, 1), dtype=jnp.float32) * 0.1
    b2 = jax.random.normal(kb2, (1, 1), dtype=jnp.float32) * 0.1

    mi = mi_forward(x, y, w1, b1, w2, b2)
    jax.block_until_ready(mi)
    ref = reference_mi(x, y, w1, b1, w2, b2)
    # bf16 first-layer operands + f32 accumulation -> loosened tolerance.
    assert jnp.allclose(mi, ref, atol=2e-2, rtol=2e-2), (mi, ref)

    # Multi-tile / multi-partial / ragged-batch check: exercises the in-kernel
    # roll boundary patch (tile-interior rows, the batch-wrap row, a straddling
    # tile and a fully-padded tile), the tail mask and partial summation.
    B2 = 300
    x2 = jax.random.normal(kx2, (B2, X_DIM), dtype=jnp.float32)
    y2 = jax.random.normal(ky2, (B2, Y_DIM), dtype=jnp.float32)
    mi2 = mi_forward(x2, y2, w1, b1, w2, b2, tb=128, num_partials=2)
    jax.block_until_ready(mi2)
    ref2 = reference_mi(x2, y2, w1, b1, w2, b2)
    assert jnp.allclose(mi2, ref2, atol=2e-2, rtol=2e-2), (mi2, ref2)

    print("KERNEL_OK")
</pallas_src>

<mosaic_0001>
module attributes {stable_mosaic.version = 11 : i64} {
  func.func @mi_kernel(%arg0: i32, %arg1: i32, %arg2: memref<8x32xf32, #tpu.memory_space<vmem>>, %arg3: memref<8x32xf32, #tpu.memory_space<vmem>>, %arg4: memref<1x1x32xf32, #tpu.memory_space<vmem>>, %arg5: memref<32x128xbf16, #tpu.memory_space<vmem>>, %arg6: memref<32x128xbf16, #tpu.memory_space<vmem>>, %arg7: memref<1x128xf32, #tpu.memory_space<vmem>>, %arg8: memref<1x128xf32, #tpu.memory_space<vmem>>, %arg9: memref<1x1xf32, #tpu.memory_space<smem>>, %arg10: memref<1x8x128xf32, #tpu.memory_space<vmem>>, %arg11: memref<1x1xf32, #tpu.memory_space<vmem>>) attributes {dimension_semantics = [#tpu.dimension_semantics<parallel>, #tpu.dimension_semantics<arbitrary>], iteration_bounds = array<i64: 1, 1>, scalar_prefetch = 0 : i64, scratch_operands = 1 : i64, tpu.core_type = #tpu.core_type<tc>, window_params = [{transform_indices = @transform_0, window_bounds = array<i64: 8, 32>}, {transform_indices = @transform_1, window_bounds = array<i64: 8, 32>}, {transform_indices = @transform_2, window_bounds = array<i64: 1, 1, 32>}, {pipeline_mode = #tpu.pipeline_mode<synchronous>, transform_indices = @transform_3, window_bounds = array<i64: 32, 128>}, {pipeline_mode = #tpu.pipeline_mode<synchronous>, transform_indices = @transform_4, window_bounds = array<i64: 32, 128>}, {pipeline_mode = #tpu.pipeline_mode<synchronous>, transform_indices = @transform_5, window_bounds = array<i64: 1, 128>}, {pipeline_mode = #tpu.pipeline_mode<synchronous>, transform_indices = @transform_6, window_bounds = array<i64: 1, 128>}, {transform_indices = @transform_7, window_bounds = array<i64: 1, 1>}, {transform_indices = @transform_8, window_bounds = array<i64: 1, 8, 128>}]} {
    %c0_i32 = arith.constant 0 : i32
    %0 = arith.cmpi eq, %arg1, %c0_i32 : i32
    %1 = arith.extui %0 : i1 to i32
    %c0_i32_0 = arith.constant 0 : i32
    %2 = arith.cmpi ne, %1, %c0_i32_0 : i32
    scf.if %2 {
      %cst_38 = arith.constant 0.000000e+00 : f32
      %83 = vector.broadcast %cst_38 : f32 to vector<1x1xf32>
      %c0_39 = arith.constant 0 : index
      %c0_40 = arith.constant 0 : index
      %84 = vector.load %arg11[%c0_39, %c0_40] : memref<1x1xf32, #tpu.memory_space<vmem>>, vector<1x1xf32>
      tpu.vector_store %arg11[%c0_39, %c0_40], %83 {strides = array<i32>} : memref<1x1xf32, #tpu.memory_space<vmem>>, vector<1x1xf32>,
    } else {
    }
    %c1_i32 = arith.constant 1 : i32
    %3 = arith.muli %arg0, %c1_i32 : i32
    %4 = arith.addi %3, %arg1 : i32
    %c8_i32 = arith.constant 8 : i32
    %5 = arith.muli %4, %c8_i32 : i32
    %c0 = arith.constant 0 : index
    %c0_1 = arith.constant 0 : index
    %6 = vector.load %arg3[%c0, %c0_1] : memref<8x32xf32, #tpu.memory_space<vmem>>, vector<8x32xf32>
    %7 = vector.extract_strided_slice %6 {offsets = [1, 0], sizes = [7, 32], strides = [1, 1]} : vector<8x32xf32> to vector<7x32xf32>
    %8 = vector.extract_strided_slice %6 {offsets = [0, 0], sizes = [1, 32], strides = [1, 1]} : vector<8x32xf32> to vector<1x32xf32>
    %9 = tpu.concatenate %7, %8 in 0 : vector<7x32xf32>, vector<1x32xf32> -> vector<8x32xf32>
    %10 = tpu.iota {dimensions = array<i32: 0>} : vector<8x1xi32>
    %c7_i32 = arith.constant 7 : i32
    %11 = arith.subi %c7_i32, %5 : i32
    %c7_i32_2 = arith.constant 7 : i32
    %12 = arith.minsi %c7_i32_2, %11 : i32
    %13 = vector.broadcast %12 : i32 to vector<8x1xi32>
    %14 = arith.cmpi eq, %10, %13 : vector<8x1xi32>
    %c0_3 = arith.constant 0 : index
    %c0_4 = arith.constant 0 : index
    %c0_5 = arith.constant 0 : index
    %15 = vector.load %arg4[%c0_3, %c0_4, %c0_5] : memref<1x1x32xf32, #tpu.memory_space<vmem>>, vector<1x1x32xf32>
    %16 = vector.shape_cast %15 : vector<1x1x32xf32> to vector<1x32xf32>
    %17 = vector.shape_cast %14 : vector<8x1xi1> to vector<8x1xi1>
    %18 = vector.broadcast %17 : vector<8x1xi1> to vector<8x32xi1>
    %19 = vector.shape_cast %16 : vector<1x32xf32> to vector<1x32xf32>
    %20 = vector.broadcast %19 : vector<1x32xf32> to vector<8x32xf32>
    %21 = arith.select %18, %20, %9 : vector<8x32xi1>, vector<8x32xf32>
    %c0_6 = arith.constant 0 : index
    %c0_7 = arith.constant 0 : index
    %22 = vector.load %arg2[%c0_6, %c0_7] : memref<8x32xf32, #tpu.memory_space<vmem>>, vector<8x32xf32>
    %23 = arith.truncf %22 : vector<8x32xf32> to vector<8x32xbf16>
    %c0_8 = arith.constant 0 : index
    %c0_9 = arith.constant 0 : index
    %24 = vector.load %arg5[%c0_8, %c0_9] : memref<32x128xbf16, #tpu.memory_space<vmem>>, vector<32x128xbf16>
    %cst = arith.constant dense<0.000000e+00> : vector<8x128xf32>
    %25 = tpu.matmul %23, %24, %cst {dimension_numbers = #tpu.dot_dimension_numbers<[1], [0], [0], [1], [0, 0, 1, 1], [], []>} : vector<8x32xbf16>, vector<32x128xbf16>, vector<8x128xf32> -> vector<8x128xf32>
    %26 = arith.truncf %6 : vector<8x32xf32> to vector<8x32xbf16>
    %c0_10 = arith.constant 0 : index
    %c0_11 = arith.constant 0 : index
    %27 = vector.load %arg6[%c0_10, %c0_11] : memref<32x128xbf16, #tpu.memory_space<vmem>>, vector<32x128xbf16>
    %cst_12 = arith.constant dense<0.000000e+00> : vector<8x128xf32>
    %28 = tpu.matmul %26, %27, %cst_12 {dimension_numbers = #tpu.dot_dimension_numbers<[1], [0], [0], [1], [0, 0, 1, 1], [], []>} : vector<8x32xbf16>, vector<32x128xbf16>, vector<8x128xf32> -> vector<8x128xf32>
    %29 = arith.truncf %21 : vector<8x32xf32> to vector<8x32xbf16>
    %c0_13 = arith.constant 0 : index
    %c0_14 = arith.constant 0 : index
    %30 = vector.load %arg6[%c0_13, %c0_14] : memref<32x128xbf16, #tpu.memory_space<vmem>>, vector<32x128xbf16>
    %cst_15 = arith.constant dense<0.000000e+00> : vector<8x128xf32>
    %31 = tpu.matmul %29, %30, %cst_15 {dimension_numbers = #tpu.dot_dimension_numbers<[1], [0], [0], [1], [0, 0, 1, 1], [], []>} : vector<8x32xbf16>, vector<32x128xbf16>, vector<8x128xf32> -> vector<8x128xf32>
    %c0_16 = arith.constant 0 : index
    %c0_17 = arith.constant 0 : index
    %32 = vector.load %arg7[%c0_16, %c0_17] : memref<1x128xf32, #tpu.memory_space<vmem>>, vector<1x128xf32>
    %33 = arith.addf %25, %28 : vector<8x128xf32>
    %34 = vector.broadcast %32 : vector<1x128xf32> to vector<8x128xf32>
    %35 = arith.addf %33, %34 : vector<8x128xf32>
    %cst_18 = arith.constant 0.00999999977 : f32
    %36 = vector.broadcast %cst_18 : f32 to vector<8x128xf32>
    %37 = arith.mulf %36, %35 : vector<8x128xf32>
    %38 = arith.maximumf %35, %37 : vector<8x128xf32>
    %39 = arith.addf %25, %31 : vector<8x128xf32>
    %40 = vector.broadcast %32 : vector<1x128xf32> to vector<8x128xf32>
    %41 = arith.addf %39, %40 : vector<8x128xf32>
    %cst_19 = arith.constant 0.00999999977 : f32
    %42 = vector.broadcast %cst_19 : f32 to vector<8x128xf32>
    %43 = arith.mulf %42, %41 : vector<8x128xf32>
    %44 = arith.maximumf %41, %43 : vector<8x128xf32>
    %c0_20 = arith.constant 0 : index
    %c0_21 = arith.constant 0 : index
    %45 = vector.load %arg8[%c0_20, %c0_21] : memref<1x128xf32, #tpu.memory_space<vmem>>, vector<1x128xf32>
    %c0_22 = arith.constant 0 : index
    %c0_23 = arith.constant 0 : index
    %46 = memref.load %arg9[%c0_22, %c0_23] : memref<1x1xf32, #tpu.memory_space<smem>>
    %cst_24 = arith.constant dense<0.000000e+00> : vector<1x8xf32>
    %47 = tpu.matmul %45, %38, %cst_24 {dimension_numbers = #tpu.dot_dimension_numbers<[1], [1], [0], [0], [0, 0, 1, 0], [], []>} : vector<1x128xf32>, vector<8x128xf32>, vector<1x8xf32> -> vector<1x8xf32>
    %48 = vector.broadcast %46 : f32 to vector<1x8xf32>
    %49 = arith.addf %47, %48 : vector<1x8xf32>
    %cst_25 = arith.constant dense<0.000000e+00> : vector<1x8xf32>
    %50 = tpu.matmul %45, %44, %cst_25 {dimension_numbers = #tpu.dot_dimension_numbers<[1], [1], [0], [0], [0, 0, 1, 0], [], []>} : vector<1x128xf32>, vector<8x128xf32>, vector<1x8xf32> -> vector<1x8xf32>
    %51 = vector.broadcast %46 : f32 to vector<1x8xf32>
    %52 = arith.addf %50, %51 : vector<1x8xf32>
    %cst_26 = arith.constant 0.000000e+00 : f32
    %53 = vector.broadcast %cst_26 : f32 to vector<1x8xf32>
    %54 = arith.subf %53, %49 : vector<1x8xf32>
    %cst_27 = arith.constant 0.000000e+00 : f32
    %55 = vector.broadcast %cst_27 : f32 to vector<1x8xf32>
    %56 = arith.maximumf %54, %55 : vector<1x8xf32>
    %57 = math.absf %54 : vector<1x8xf32>
    %cst_28 = arith.constant 0.000000e+00 : f32
    %58 = vector.broadcast %cst_28 : f32 to vector<1x8xf32>
    %59 = arith.subf %58, %57 : vector<1x8xf32>
    %60 = math.exp %59 : vector<1x8xf32>
    %61 = math.log1p %60 : vector<1x8xf32>
    %62 = arith.addf %56, %61 : vector<1x8xf32>
    %cst_29 = arith.constant 0.000000e+00 : f32
    %63 = vector.broadcast %cst_29 : f32 to vector<1x8xf32>
    %64 = arith.maximumf %52, %63 : vector<1x8xf32>
    %65 = math.absf %52 : vector<1x8xf32>
    %cst_30 = arith.constant 0.000000e+00 : f32
    %66 = vector.broadcast %cst_30 : f32 to vector<1x8xf32>
    %67 = arith.subf %66, %65 : vector<1x8xf32>
    %68 = math.exp %67 : vector<1x8xf32>
    %69 = math.log1p %68 : vector<1x8xf32>
    %70 = arith.addf %64, %69 : vector<1x8xf32>
    %71 = arith.addf %62, %70 : vector<1x8xf32>
    %c0_31 = arith.constant 0 : index
    %c0_32 = arith.constant 0 : index
    %72 = vector.load %arg11[%c0_31, %c0_32] : memref<1x1xf32, #tpu.memory_space<vmem>>, vector<1x1xf32>
    %73 = vector.shape_cast %71 : vector<1x8xf32> to vector<1x1x8xf32>
    %cst_33 = arith.constant dense<0.000000e+00> : vector<1xf32>
    %74 = vector.multi_reduction <add>, %73, %cst_33 [1, 2] : vector<1x1x8xf32> to vector<1xf32>
    %75 = vector.shape_cast %74 : vector<1xf32> to vector<1x1x1xf32>
    %76 = vector.extract %75[0, 0, 0] : f32 from vector<1x1x1xf32>
    %77 = vector.broadcast %76 : f32 to vector<1x1xf32>
    %78 = arith.addf %72, %77 : vector<1x1xf32>
    %c0_34 = arith.constant 0 : index
    %c0_35 = arith.constant 0 : index
    %79 = vector.load %arg11[%c0_34, %c0_35] : memref<1x1xf32, #tpu.memory_space<vmem>>, vector<1x1xf32>
    tpu.vector_store %arg11[%c0_34, %c0_35], %78 {strides = array<i32>} : memref<1x1xf32, #tpu.memory_space<vmem>>, vector<1x1xf32>,
    %c0_i32_36 = arith.constant 0 : i32
    %80 = arith.cmpi eq, %arg1, %c0_i32_36 : i32
    %81 = arith.extui %80 : i1 to i32
    %c0_i32_37 = arith.constant 0 : i32
    %82 = arith.cmpi ne, %81, %c0_i32_37 : i32
    scf.if %82 {
      %c0_38 = arith.constant 0 : index
      %c0_39 = arith.constant 0 : index
      %83 = vector.load %arg11[%c0_38, %c0_39] : memref<1x1xf32, #tpu.memory_space<vmem>>, vector<1x1xf32>
      %cst_40 = arith.constant -1.250000e-01 : f32
      %84 = vector.broadcast %cst_40 : f32 to vector<1x1xf32>
      %85 = arith.mulf %83, %84 : vector<1x1xf32>
      %86 = vector.shape_cast %85 : vector<1x1xf32> to vector<1x1x1xf32>
      %87 = vector.shape_cast %86 : vector<1x1x1xf32> to vector<1x1x1xf32>
      %88 = vector.broadcast %87 : vector<1x1x1xf32> to vector<1x8x128xf32>
      %c0_41 = arith.constant 0 : index
      %c0_42 = arith.constant 0 : index
      %c0_43 = arith.constant 0 : index
      %89 = vector.load %arg10[%c0_41, %c0_42, %c0_43] : memref<1x8x128xf32, #tpu.memory_space<vmem>>, vector<1x8x128xf32>
      tpu.vector_store %arg10[%c0_41, %c0_42, %c0_43], %88 {strides = array<i32>} : memref<1x8x128xf32, #tpu.memory_space<vmem>>, vector<1x8x128xf32>,
    } else {
    }
    return
  }
  func.func @transform_0(%arg0: i32, %arg1: i32) -> (i32, i32) {
    %c1_i32 = arith.constant 1 : i32
    %0 = arith.muli %arg0, %c1_i32 : i32
    %1 = arith.addi %0, %arg1 : i32
    %c0_i32 = arith.constant 0 : i32
    %c0_i32_0 = arith.constant 0 : i32
    return %1, %c0_i32 : i32, i32
  }
  func.func @transform_1(%arg0: i32, %arg1: i32) -> (i32, i32) {
    %c1_i32 = arith.constant 1 : i32
    %0 = arith.muli %arg0, %c1_i32 : i32
    %1 = arith.addi %0, %arg1 : i32
    %c0_i32 = arith.constant 0 : i32
    %c0_i32_0 = arith.constant 0 : i32
    return %1, %c0_i32 : i32, i32
  }
  func.func @transform_2(%arg0: i32, %arg1: i32) -> (i32, i32, i32) {
    %c1_i32 = arith.constant 1 : i32
    %0 = arith.muli %arg0, %c1_i32 : i32
    %1 = arith.addi %0, %arg1 : i32
    %c0_i32 = arith.constant 0 : i32
    %c0_i32_0 = arith.constant 0 : i32
    %c0_i32_1 = arith.constant 0 : i32
    return %1, %c0_i32, %c0_i32_0 : i32, i32, i32
  }
  func.func @transform_3(%arg0: i32, %arg1: i32) -> (i32, i32) {
    %c0_i32 = arith.constant 0 : i32
    %c0_i32_0 = arith.constant 0 : i32
    %c0_i32_1 = arith.constant 0 : i32
    return %c0_i32, %c0_i32_0 : i32, i32
  }
  func.func @transform_4(%arg0: i32, %arg1: i32) -> (i32, i32) {
    %c0_i32 = arith.constant 0 : i32
    %c0_i32_0 = arith.constant 0 : i32
    %c0_i32_1 = arith.constant 0 : i32
    return %c0_i32, %c0_i32_0 : i32, i32
  }
  func.func @transform_5(%arg0: i32, %arg1: i32) -> (i32, i32) {
    %c0_i32 = arith.constant 0 : i32
    %c0_i32_0 = arith.constant 0 : i32
    %c0_i32_1 = arith.constant 0 : i32
    return %c0_i32, %c0_i32_0 : i32, i32
  }
  func.func @transform_6(%arg0: i32, %arg1: i32) -> (i32, i32) {
    %c0_i32 = arith.constant 0 : i32
    %c0_i32_0 = arith.constant 0 : i32
    %c0_i32_1 = arith.constant 0 : i32
    return %c0_i32, %c0_i32_0 : i32, i32
  }
  func.func @transform_7(%arg0: i32, %arg1: i32) -> (i32, i32) {
    %c0_i32 = arith.constant 0 : i32
    %c0_i32_0 = arith.constant 0 : i32
    %c0_i32_1 = arith.constant 0 : i32
    return %c0_i32, %c0_i32_0 : i32, i32
  }
  func.func @transform_8(%arg0: i32, %arg1: i32) -> (i32, i32, i32) {
    %c0_i32 = arith.constant 0 : i32
    %c0_i32_0 = arith.constant 0 : i32
    %c0_i32_1 = arith.constant 0 : i32
    return %arg0, %c0_i32, %c0_i32_0 : i32, i32, i32
  }
}

</mosaic_0001>

<llo_original>
// kernel: tpu_custom_call.1
$region0: #{tpu_custom_call.1}
  #allocation0 [shape = 'u32[]', space=smem, size = 0x4, offset = 0x4, fixed_abs, tag = 'smem constant byte address 0x4 - core index']
  #allocation1 [shape = 'u32[72,128]{1,0:T(1,128)}', space=vmem, size = 0x9000, scoped, tag = 'internal scratch']
  #allocation2 [shape = 'f32[1,1]{1,0:T(1,128)}', space=vmem, size = 0x200, scoped, tag = 'scratch operand']
  #allocation3 [shape = 'f32[1,1]{1,0:T(1,128)S(6)}', space=smem, size = 0x200, scoped, tag = 'scoped memory for tpu_custom_call.1']
  %s0 = inlined_call_operand.hbm [shape: f32[8,32], index: 0, kind: input, shape index: {}]
  %s1 = inlined_call_operand.hbm [shape: f32[8,32], index: 1, kind: input, shape index: {}]
  %s2 = inlined_call_operand.vmem [shape: f32[1,1,32], index: 2, kind: input, shape index: {}]
  %s3 = inlined_call_operand.hbm [shape: bf16[32,128], index: 3, kind: input, shape index: {}]
  %s4 = inlined_call_operand.hbm [shape: bf16[32,128], index: 4, kind: input, shape index: {}]
  %s5 = inlined_call_operand.vmem [shape: f32[1,128], index: 5, kind: input, shape index: {}]
  %s6 = inlined_call_operand.vmem [shape: f32[1,128], index: 6, kind: input, shape index: {}]
  %s7 = inlined_call_operand.<no memory space> [shape: f32[1,1], index: 7, kind: input, shape index: {}]
  %s8 = inlined_call_operand.hbm [shape: f32[1,8,128], index: 8, kind: output, shape index: {}]
  %s9 = sld [smem:[#allocation0]]
  $region66: #{tpu_custom_call.1} parent=0
    _
  %s11 = ssub.s32 1, %s9
  %s12 = scalar_select 0, %s11, %s9
  %13 = sst [smem:[#allocation3]] %s7
  $region1: #{tpu_custom_call.1} parent=0
    #allocation4 [shape = 'u8[4096]{0}', space=vmem, size = 0x1000, scoped, tag = 'input window, operand 0, single buffered']
    #allocation5 [shape = 's32[1]{0}', space=sflag, size = 0x4, scoped, tag = 'scoped memory for tpu_custom_call.1']
    #allocation6 [shape = 's32[1]{0}', space=sflag, size = 0x4, scoped, tag = 'scoped memory for tpu_custom_call.1']
    #allocation7 [shape = 'u8[4096]{0}', space=vmem, size = 0x1000, scoped, tag = 'input window, operand 1, single buffered']
    #allocation8 [shape = 's32[1]{0}', space=sflag, size = 0x4, scoped, tag = 'scoped memory for tpu_custom_call.1']
    #allocation9 [shape = 'u8[8192]{0}', space=vmem, size = 0x2000, scoped, tag = 'input window, operand 3, single buffered']
    #allocation10 [shape = 'u8[8192]{0}', space=vmem, size = 0x2000, scoped, tag = 'input window, operand 4, single buffered']
    #allocation11 [shape = 's32[1]{0}', space=sflag, size = 0x4, scoped, tag = 'scoped memory for tpu_custom_call.1']
    #allocation12 [shape = 'u8[4096]{0}', space=vmem, size = 0x1000, scoped, tag = 'output window, operand 0, single buffered']
    %14 = vsyncpa [#allocation5], 0
    %15 = vsyncpa [#allocation8], 0
    %16 = vsyncpa [#allocation11], 0
    %17 = vsyncpa [#allocation6], 0
    // Predicated region
    $region2: #{tpu_custom_call.1} parent=1 // pred_check
      _
    $region3: #{tpu_custom_call.1} parent=1 // pred_check_branch
      %19 = sbr.rel (0) target = $region5
    $region4: #{tpu_custom_call.1} parent=1 // pred_region
      %s20 = sadd.s32 0, 0
      %22 = vsyncadd [#allocation5], 0
      %s23 = smul.addr %s20, 8
      %s24 = scalar_lea.hbm %s0, %s23
      %s26 = sshll.u32 %s24, 4
      %s27 = int_to_ptr.hbm [resolvable:$true] %s26
      %s28 = sshll.u32 [#allocation4], 4
      %s29 = int_to_ptr.vmem [resolvable:$true] %s28
      %31 = dma.hbm_to_vmem [thread:$0]  %s27, 128, %s29, [#allocation5]
    $region5: #{tpu_custom_call.1} parent=1 // pred_fallthru
      _
    // Predicated region
    $region6: #{tpu_custom_call.1} parent=1 // pred_check
      _
    $region7: #{tpu_custom_call.1} parent=1 // pred_check_branch
      %33 = sbr.rel (0) target = $region9
    $region8: #{tpu_custom_call.1} parent=1 // pred_region
      %s34 = sadd.s32 0, 0
      %36 = vsyncadd [#allocation8], 0
      %s37 = smul.addr %s34, 8
      %s38 = scalar_lea.hbm %s1, %s37
      %s40 = sshll.u32 %s38, 4
      %s41 = int_to_ptr.hbm [resolvable:$true] %s40
      %s42 = sshll.u32 [#allocation7], 4
      %s43 = int_to_ptr.vmem [resolvable:$true] %s42
      %45 = dma.hbm_to_vmem [thread:$0]  %s41, 128, %s43, [#allocation8]
    $region9: #{tpu_custom_call.1} parent=1 // pred_fallthru
      _
    // Predicated region
    $region10: #{tpu_custom_call.1} parent=1 // pred_check
      _
    $region11: #{tpu_custom_call.1} parent=1 // pred_check_branch
      %47 = sbr.rel (0) target = $region13
    $region12: #{tpu_custom_call.1} parent=1 // pred_region
      %s48 = sadd.s32 0, 0
      %p49 = scmp.lt.s32.totalorder %s48, 0
      %s50 = scalar_select %p49, %s48, 0
      %s51 = scalar_lea.vmem %s2, %s50
      %s52 = sadd.s32 0, 0
    $region13: #{tpu_custom_call.1} parent=1 // pred_fallthru
      _
    // Predicated region
    $region14: #{tpu_custom_call.1} parent=1 // pred_check
      _
    $region15: #{tpu_custom_call.1} parent=1 // pred_check_branch
      %54 = sbr.rel (0) target = $region17
    $region16: #{tpu_custom_call.1} parent=1 // pred_region
      %56 = vsyncadd [#allocation8], 0
      %s57 = sshll.u32 %s3, 4
      %s58 = int_to_ptr.hbm [resolvable:$true] %s57
      %s59 = sshll.u32 [#allocation9], 4
      %s60 = int_to_ptr.vmem [resolvable:$true] %s59
      %65 = dma.hbm_to_vmem [thread:$0]  %s58, 256, %s60, [#allocation8], 64, 64, 4
    $region17: #{tpu_custom_call.1} parent=1 // pred_fallthru
      _
    // Predicated region
    $region18: #{tpu_custom_call.1} parent=1 // pred_check
      _
    $region19: #{tpu_custom_call.1} parent=1 // pred_check_branch
      %67 = sbr.rel (0) target = $region21
    $region20: #{tpu_custom_call.1} parent=1 // pred_region
      %69 = vsyncadd [#allocation11], 0
      %s70 = sshll.u32 %s4, 4
      %s71 = int_to_ptr.hbm [resolvable:$true] %s70
      %s72 = sshll.u32 [#allocation10], 4
      %s73 = int_to_ptr.vmem [resolvable:$true] %s72
      %78 = dma.hbm_to_vmem [thread:$0]  %s71, 256, %s73, [#allocation11], 64, 64, 4
    $region21: #{tpu_custom_call.1} parent=1 // pred_fallthru
      _
    // Predicated region
    $region22: #{tpu_custom_call.1} parent=1 // pred_check
      _
    $region23: #{tpu_custom_call.1} parent=1 // pred_check_branch
      %80 = sbr.rel (0) target = $region25
    $region24: #{tpu_custom_call.1} parent=1 // pred_region
      _
    $region25: #{tpu_custom_call.1} parent=1 // pred_fallthru
      _
    // Predicated region
    $region26: #{tpu_custom_call.1} parent=1 // pred_check
      _
    $region27: #{tpu_custom_call.1} parent=1 // pred_check_branch
      %82 = sbr.rel (0) target = $region29
    $region28: #{tpu_custom_call.1} parent=1 // pred_region
      _
    $region29: #{tpu_custom_call.1} parent=1 // pred_fallthru
      _
    // Predicated region
    $region30: #{tpu_custom_call.1} parent=1 // pred_check
      _
    $region31: #{tpu_custom_call.1} parent=1 // pred_check_branch
      %84 = sbr.rel (0) target = $region33
    $region32: #{tpu_custom_call.1} parent=1 // pred_region
      _
    $region33: #{tpu_custom_call.1} parent=1 // pred_fallthru
      _
    // Predicated region
    $region34: #{tpu_custom_call.1} parent=1 // pred_check
      _
    $region35: #{tpu_custom_call.1} parent=1 // pred_check_branch
      %86 = sbr.rel (0) target = $region37
    $region36: #{tpu_custom_call.1} parent=1 // pred_region
      %88 = dma.done [#allocation5], 128
    $region37: #{tpu_custom_call.1} parent=1 // pred_fallthru
      _
    // Predicated region
    $region38: #{tpu_custom_call.1} parent=1 // pred_check
      _
    $region39: #{tpu_custom_call.1} parent=1 // pred_check_branch
      %90 = sbr.rel (0) target = $region41
    $region40: #{tpu_custom_call.1} parent=1 // pred_region
      %92 = dma.done [#allocation8], 128
    $region41: #{tpu_custom_call.1} parent=1 // pred_fallthru
      _
    // Predicated region
    $region42: #{tpu_custom_call.1} parent=1 // pred_check
      _
    $region43: #{tpu_custom_call.1} parent=1 // pred_check_branch
      %94 = sbr.rel (0) target = $region45
    $region44: #{tpu_custom_call.1} parent=1 // pred_region
      %96 = dma.done [#allocation8], 256
    $region45: #{tpu_custom_call.1} parent=1 // pred_fallthru
      _
    // Predicated region
    $region46: #{tpu_custom_call.1} parent=1 // pred_check
      _
    $region47: #{tpu_custom_call.1} parent=1 // pred_check_branch
      %98 = sbr.rel (0) target = $region49
    $region48: #{tpu_custom_call.1} parent=1 // pred_region
      %100 = dma.done [#allocation11], 256
    $region49: #{tpu_custom_call.1} parent=1 // pred_fallthru
      _
    %s101 = sadd.s32 0, 0
    %p102 = scmp.lt.s32.totalorder %s101, 0
    %s103 = scalar_select %p102, %s101, 0
    %s104 = scalar_lea.vmem %s2, %s103
    %s105 = sadd.s32 0, 0
    %s106 = sadd.s32 0, 0
    %s107 = sadd.s32 0, 0
    %p108 = scmp.lt.s32.totalorder %s107, 0
    %s109 = scalar_select %p108, %s107, 0
    %s110 = scalar_lea.vmem %s2, %s109
    %s111 = sadd.s32 0, 0
    %p113 = scmp.eq.s32.totalorder 0, 0
    // Predicated region
    $region50: #{tpu_custom_call.1} parent=1 // pred_check
      %p114 = pneg %p113
    $region51: #{tpu_custom_call.1} parent=1 // pred_check_branch
      %116 = sbr.rel (%p114) target = $region53
    $region52: #{tpu_custom_call.1} parent=1 // pred_region
      %vm117 = vcmask 0
      %118 = vst.msk [vmem:[#allocation2] sm:$0x1] %vm117, 0.0
    $region53: #{tpu_custom_call.1} parent=1 // pred_fallthru
      _
    %s119 = sadd.s32 0, 0
    %s120 = smul.u32 %s119, 8
    %v121 = vld [vmem:[#allocation7] sm:$0xff]
    %v123 = vrot.slane %v121, 1
    %vm125 = vcmask 1046528
    %v126 = vsel %vm125, %v123, %v123
    %v127 = vlaneseq
    %v128 = vshrl.u32 %v127, 7
    %s129 = ssub.s32 7, %s120
    %p130 = scmp.lt.s32.totalorder %s129, 7
    %s131 = scalar_select %p130, %s129, 7
    %v132 = vstv %s131
    %vm133 = vcmp.eq.s32.totalorder %v128, %v132
    %v134 = vld [vmem:[%s110] sm:$0x1]
    %v135 = vsel %vm133, 1, 0
    %vm136 = vcmp.eq.s32.totalorder %v135, 1
    %v138 = vperm.slane %v134, 0
    %v140 = vsel %vm136, %v138, %v126
    %v141 = vld [vmem:[#allocation4] sm:$0xff]
    %v142 = vpack.c.bf16 %v141, %v141
    %v143 = vld [vmem:[#allocation9] sm:$0xf]
    %v144 = vld [vmem:[#allocation9 + $0x4] sm:$0xf]
    %v145 = vld [vmem:[#allocation9 + $0x8] sm:$0xf]
    %v146 = vld [vmem:[#allocation9 + $0xc] sm:$0xf]
    %v151 = vunpack.c.l.b16 %v143
    %v152 = vunpack.c.l.b16 %v144
    %v153 = vunpack.c.l.b16 %v145
    %v154 = vunpack.c.l.b16 %v146
    %v155 = vpack.c.b16 %v152, %v151
    %v156 = vpack.c.b16 %v154, %v153
    %vm159 = vcmask 261120
    %v161 = vsel %vm159, %v142, 0
    %163 = vmatpush.bf16.msra.mxu0 0
    %164 = vmatpush.bf16.msra.mxu0 0
    %165 = vmatpush.bf16.msra.mxu0 0
    %166 = vmatpush.bf16.msra.mxu0 0
    %167 = vmatpush.bf16.msra.mxu0 0
    %168 = vmatpush.bf16.msra.mxu0 0
    %169 = vmatpush.bf16.msra.mxu0 %v156
    %170 = vmatpush.bf16.msra.mxu0 %v155
    %171 = vmatmul.bf16.gmra.mxu0 %v161
    %v172 = vpop.f32.mrf.mxu0
    %v173 = vadd.f32 0.0, %v172
    %v174 = vpop.f32.mrf.mxu0
    %175 = vdwg.mxu0
    %v176 = vpack.c.bf16 %v121, %v121
    %v177 = vld [vmem:[#allocation10] sm:$0xf]
    %v178 = vld [vmem:[#allocation10 + $0x4] sm:$0xf]
    %v179 = vld [vmem:[#allocation10 + $0x8] sm:$0xf]
    %v180 = vld [vmem:[#allocation10 + $0xc] sm:$0xf]
    %v185 = vunpack.c.l.b16 %v177
    %v186 = vunpack.c.l.b16 %v178
    %v187 = vunpack.c.l.b16 %v179
    %v188 = vunpack.c.l.b16 %v180
    %v189 = vpack.c.b16 %v186, %v185
    %v190 = vpack.c.b16 %v188, %v187
    %v194 = vsel %vm159, %v176, 0
    %196 = vmatpush.bf16.msra.mxu0 0
    %197 = vmatpush.bf16.msra.mxu0 0
    %198 = vmatpush.bf16.msra.mxu0 0
    %199 = vmatpush.bf16.msra.mxu0 0
    %200 = vmatpush.bf16.msra.mxu0 0
    %201 = vmatpush.bf16.msra.mxu0 0
    %202 = vmatpush.bf16.msra.mxu0 %v190
    %203 = vmatpush.bf16.msra.mxu0 %v189
    %204 = vmatmul.bf16.gmra.mxu0 %v194
    %v205 = vpop.f32.mrf.mxu0
    %v206 = vadd.f32 0.0, %v205
    %v207 = vpop.f32.mrf.mxu0
    %208 = vdwg.mxu0
    %v209 = vpack.c.bf16 %v140, %v140
    %v211 = vsel %vm159, %v209, 0
    %213 = vmatpush.bf16.msra.mxu0 0
    %214 = vmatpush.bf16.msra.mxu0 0
    %215 = vmatpush.bf16.msra.mxu0 0
    %216 = vmatpush.bf16.msra.mxu0 0
    %217 = vmatpush.bf16.msra.mxu0 0
    %218 = vmatpush.bf16.msra.mxu0 0
    %219 = vmatpush.bf16.msra.mxu0 %v190
    %220 = vmatpush.bf16.msra.mxu0 %v189
    %221 = vmatmul.bf16.gmra.mxu0 %v211
    %v222 = vpop.f32.mrf.mxu0
    %v223 = vadd.f32 0.0, %v222
    %v224 = vpop.f32.mrf.mxu0
    %225 = vdwg.mxu0
    %v226 = vld [vmem:[%s5] sm:$0x1]
    %v227 = vadd.f32 %v173, %v206
    %v229 = vperm.slane %v226, 0
    %v231 = vadd.f32 %v227, %v229
    %v232 = vmul.f32 %v231, 0.01
    %v233 = vmax.f32 %v231, %v232
    %v234 = vadd.f32 %v173, %v223
    %v235 = vadd.f32 %v234, %v229
    %v236 = vmul.f32 %v235, 0.01
    %v237 = vmax.f32 %v235, %v236
    %v238 = vld [vmem:[%s6] sm:$0x1]
    %s239 = sld [smem:[#allocation3]]
    %v240 = vstv %s239
    %241 = vmatpush.xpose.msra.mxu0 0.0
    %242 = vmatpush.xpose.msra.mxu0 0.0
    %243 = vmatpush.xpose.msra.mxu0 0.0
    %244 = vmatpush.xpose.msra.mxu0 0.0
    %245 = vmatpush.xpose.msra.mxu0 0.0
    %246 = vmatpush.xpose.msra.mxu0 0.0
    %247 = vmatpush.xpose.msra.mxu0 0.0
    %248 = vmatpush.xpose.msra.mxu0 0.0
    %249 = vmatpush.xpose.msra.mxu0 0.0
    %250 = vmatpush.xpose.msra.mxu0 0.0
    %251 = vmatpush.xpose.msra.mxu0 0.0
    %252 = vmatpush.xpose.msra.mxu0 0.0
    %253 = vmatpush.xpose.msra.mxu0 0.0
    %254 = vmatpush.xpose.msra.mxu0 0.0
    %255 = vmatpush.xpose.msra.mxu0 0.0
    %256 = vmatpush.xpose.msra.mxu0 %v233
    %257 = vmatmul.f32.gmra.mxu0 %v238
    %v258 = vpop.f32.mrf.mxu0
    %v259 = vadd.f32 %v240, %v258
    %260 = vdwg.mxu0
    %261 = vmatpush.xpose.msra.mxu0 0.0
    %262 = vmatpush.xpose.msra.mxu0 0.0
    %263 = vmatpush.xpose.msra.mxu0 0.0
    %264 = vmatpush.xpose.msra.mxu0 0.0
    %265 = vmatpush.xpose.msra.mxu0 0.0
    %266 = vmatpush.xpose.msra.mxu0 0.0
    %267 = vmatpush.xpose.msra.mxu0 0.0
    %268 = vmatpush.xpose.msra.mxu0 0.0
    %269 = vmatpush.xpose.msra.mxu0 0.0
    %270 = vmatpush.xpose.msra.mxu0 0.0
    %271 = vmatpush.xpose.msra.mxu0 0.0
    %272 = vmatpush.xpose.msra.mxu0 0.0
    %273 = vmatpush.xpose.msra.mxu0 0.0
    %274 = vmatpush.xpose.msra.mxu0 0.0
    %275 = vmatpush.xpose.msra.mxu0 0.0
    %276 = vmatpush.xpose.msra.mxu0 %v237
    %277 = vmatmul.f32.gmra.mxu0 %v238
    %v278 = vpop.f32.mrf.mxu0
    %v279 = vadd.f32 %v240, %v278
    %280 = vdwg.mxu0
    %v281 = vsub.f32 0.0, %v259
    %v282 = vmax.f32 %v281, 0.0
    %v283 = vand.u32 2147483647, %v281
    %v284 = vsub.f32 0.0, %v283
    %v285 = vmul.f32 %v284, 1.442695
    %v286 = vpow.pop %v285
    %v287 = vadd.f32 %v286, 1.0
    %v288 = vlog2.pop %v287
    %v289 = vmul.f32 %v288, 0.6931472
    %v290 = vmul.f32 -0.5, %v286
    %v291 = vadd.f32 %v290, 1.0
    %v292 = vmul.f32 %v291, %v286
    %v293 = vand.u32 2147483647, %v286
    %vm294 = vcmp.lt.f32.partialorder %v293, 0.0004427343
    %v295 = vsel %vm294, %v292, %v289
    %v296 = vadd.f32 %v282, %v295
    %v297 = vmax.f32 %v279, 0.0
    %v298 = vand.u32 2147483647, %v279
    %v299 = vsub.f32 0.0, %v298
    %v300 = vmul.f32 %v299, 1.442695
    %v301 = vpow.pop %v300
    %v302 = vadd.f32 %v301, 1.0
    %v303 = vlog2.pop %v302
    %v304 = vmul.f32 %v303, 0.6931472
    %v305 = vmul.f32 -0.5, %v301
    %v306 = vadd.f32 %v305, 1.0
    %v307 = vmul.f32 %v306, %v301
    %v308 = vand.u32 2147483647, %v301
    %vm309 = vcmp.lt.f32.partialorder %v308, 0.0004427343
    %v310 = vsel %vm309, %v307, %v304
    %v311 = vadd.f32 %v297, %v310
    %v312 = vadd.f32 %v296, %v311
    %v313 = vld [vmem:[#allocation2] sm:$0x1]
    %vm314 = vcmask 57344
    %v315 = vsel %vm314, %v312, 0.0
    %316 = vadd.xlane.f32.xlu0 %v315
    %v317 = vpop.xlane.xlu0 %316
    %v318 = vrot.slane %v317, 4
    %v319 = vadd.f32 %v317, %v318
    %v320 = vrot.slane %v319, 2
    %v321 = vadd.f32 %v319, %v320
    %v322 = vrot.slane %v321, 1
    %v323 = vadd.f32 %v321, %v322
    %s324 = vtos %v323
    %v325 = vstv %s324
    %v326 = vadd.f32 %v313, %v325
    %vm327 = vcmask 0
    %328 = vst.msk [vmem:[#allocation2] sm:$0x1] %vm327, %v326
    // Predicated region
    $region54: #{tpu_custom_call.1} parent=1 // pred_check
      %p329 = pneg %p113
    $region55: #{tpu_custom_call.1} parent=1 // pred_check_branch
      %331 = sbr.rel (%p329) target = $region57
    $region56: #{tpu_custom_call.1} parent=1 // pred_region
      %v332 = vld [vmem:[#allocation2] sm:$0x1]
      %v333 = vmul.f32 %v332, -0.125
      %v335 = vperm.slane %v333, 0
      %336 = vset.pattern.permute.xlu0 0
      %337 = vperm.xlu0 %336, %v335
      %v338 = vpop.permute.xlu0 %337
      %340 = vst [vmem:[#allocation12] sm:$0xff] %v338
    $region57: #{tpu_custom_call.1} parent=1 // pred_fallthru
      _
    // Predicated region
    $region58: #{tpu_custom_call.1} parent=1 // pred_check
      _
    $region59: #{tpu_custom_call.1} parent=1 // pred_check_branch
      %342 = sbr.rel (0) target = $region61
    $region60: #{tpu_custom_call.1} parent=1 // pred_region
      %344 = vsyncadd [#allocation6], 0
      %s346 = sshll.u32 [#allocation12], 4
      %s347 = int_to_ptr.vmem [resolvable:$true] %s346
      %s348 = sshll.u32 %s8, 4
      %s349 = int_to_ptr.hbm [resolvable:$true] %s348
      %351 = dma.vmem_to_hbm [thread:$0]  %s347, 128, %s349, [#allocation6]
    $region61: #{tpu_custom_call.1} parent=1 // pred_fallthru
      _
    // Predicated region
    $region62: #{tpu_custom_call.1} parent=1 // pred_check
      _
    $region63: #{tpu_custom_call.1} parent=1 // pred_check_branch
      %353 = sbr.rel (0) target = $region65
    $region64: #{tpu_custom_call.1} parent=1 // pred_region
      %355 = dma.done [#allocation6], 128
    $region65: #{tpu_custom_call.1} parent=1 // pred_fallthru
      _
    %356 = vsyncpa [#allocation5], 1
    %357 = vsyncpa [#allocation8], 1
    %358 = vsyncpa [#allocation11], 1
    %359 = vsyncpa [#allocation6], 1

</llo_original>
